<compile_context>
chip_gen: v7x
topology: tpu7x:2x2x1
jax: 0.10.0
libtpu: 0.0.40
codegen_flags: <defaults>
</compile_context>

<pallas_src>
import jax
import jax.numpy as jnp
from jax.experimental import pallas as pl
from jax.experimental.pallas import tpu as pltpu

_LANES = 128
_SUBLANES = 8


def _content_loss_single_kernel(x_ref, t_ref, loss_ref):
    """Single-block path: whole (rows, lanes) slab resident in VMEM."""
    d = x_ref[...].astype(jnp.float32) - t_ref[...].astype(jnp.float32)
    loss_ref[0, 0] = jnp.sum(d * d)


def _content_loss_tiled_kernel(x_ref, t_ref, loss_ref, acc_ref):
    """Tiled path: vreg-sized (8,128) VMEM accumulator, one XLU reduce/split."""
    i = pl.program_id(1)  # reduction axis (axis 0 is the parallel split axis)

    @pl.when(i == 0)
    def _():
        acc_ref[...] = jnp.zeros_like(acc_ref)

    d = x_ref[...].astype(jnp.float32) - t_ref[...].astype(jnp.float32)
    sq = d * d
    # Fold the (tile_rows, 128) tile onto a single vreg: the leading-axis sum
    # lowers to pure VPU adds (no cross-lane XLU work inside the loop).
    acc_ref[...] += jnp.sum(sq.reshape(-1, _SUBLANES, _LANES), axis=0)

    @pl.when(i == pl.num_programs(1) - 1)
    def _():
        # Single cross-lane reduce per split, then a scalar SMEM store.
        loss_ref[0, 0] = jnp.sum(acc_ref[...])


def content_loss_forward(x, target, *, tile_rows=4096, num_splits=2):
    """ContentLoss.forward: returns (input, loss), loss = mean((x - target)**2).

    The pass-through output is handled entirely in the wrapper (returns `x`),
    so the kernel only streams x and target once from HBM.
    """
    assert x.shape == target.shape, "input/target shape mismatch"
    assert tile_rows % _SUBLANES == 0, "tile_rows must be a multiple of 8"
    lanes = _LANES
    n = x.size

    xf = jnp.ravel(x)
    tf = jnp.ravel(target)
    rows = pl.cdiv(n, lanes)

    if rows <= tile_rows:
        # ---- tiny-input path: one block, no grid loop, no accumulator ----
        padded = rows * lanes
        if padded != n:
            # Zero-padding BOTH operands contributes 0 to the SSD.
            xf = jnp.pad(xf, (0, padded - n))
            tf = jnp.pad(tf, (0, padded - n))
        x2 = xf.reshape(rows, lanes)
        t2 = tf.reshape(rows, lanes)
        ssd = pl.pallas_call(
            _content_loss_single_kernel,
            out_shape=jax.ShapeDtypeStruct((1, 1), jnp.float32),
            in_specs=[
                pl.BlockSpec(memory_space=pltpu.MemorySpace.VMEM),
                pl.BlockSpec(memory_space=pltpu.MemorySpace.VMEM),
            ],
            out_specs=pl.BlockSpec(memory_space=pltpu.MemorySpace.SMEM),
        )(x2, t2)
        loss = ssd[0, 0] * (1.0 / n)
        return x, loss

    # ---- tiled streaming-reduce path ------------------------------------
    steps = pl.cdiv(rows, tile_rows)
    rows_pad = steps * tile_rows
    padded = rows_pad * lanes
    if padded != n:
        xf = jnp.pad(xf, (0, padded - n))
        tf = jnp.pad(tf, (0, padded - n))
    x2 = xf.reshape(rows_pad, lanes)
    t2 = tf.reshape(rows_pad, lanes)

    # Leading "parallel" axis of independent partial sums: on v7x each of the
    # two TensorCores streams its own half of the rows; on v5e/v6e (1 TC) it
    # is a harmless serial loop. Fall back to a single split if it doesn't
    # divide the step count.
    splits = num_splits if (num_splits > 1 and steps % num_splits == 0) else 1
    steps_per_split = steps // splits

    def in_map(c, i):
        return (c * steps_per_split + i, 0)

    partials = pl.pallas_call(
        _content_loss_tiled_kernel,
        out_shape=jax.ShapeDtypeStruct((splits, 1), jnp.float32),
        grid_spec=pltpu.PrefetchScalarGridSpec(
            num_scalar_prefetch=0,
            grid=(splits, steps_per_split),
            in_specs=[
                pl.BlockSpec((tile_rows, lanes), in_map,
                             pipeline_mode=pl.Buffered(3)),
                pl.BlockSpec((tile_rows, lanes), in_map,
                             pipeline_mode=pl.Buffered(3)),
            ],
            out_specs=pl.BlockSpec(
                (1, 1), lambda c, i: (c, 0),
                memory_space=pltpu.MemorySpace.SMEM,
            ),
            scratch_shapes=[pltpu.VMEM((_SUBLANES, lanes), jnp.float32)],
        ),
        compiler_params=pltpu.CompilerParams(
            dimension_semantics=("parallel", "arbitrary"),
            # 2 inputs x 3 buffers x (4096*128*4B) = 12 MiB at the default
            # tile; 32 MiB is safe on all generations (v7x physical = 64 MiB,
            # v5e scoped default would otherwise be only 16 MiB).
            vmem_limit_bytes=32 * 1024 * 1024,
        ),
    )(x2, t2)

    # mean = sum(partials) / N, applied outside the kernel with Python-float N.
    loss = jnp.sum(partials) * (1.0 / n)
    # TODO(synk): add a jax.custom_vjp (dloss/dx = 2*(x-target)/N, identity
    # gradient for the pass-through) if the loss must be differentiated as in
    # the original style-transfer optimization loop.
    return x, loss


if __name__ == "__main__":
    key = jax.random.PRNGKey(0)
    k1, k2, k3, k4 = jax.random.split(key, 4)
    B, C, H, W = 2, 4, 16, 16
    x = jax.random.normal(k1, (B, C, H, W), dtype=jnp.float32)
    # "target" is the detached feature map captured at module construction.
    target = jax.random.normal(k2, (B, C, H, W), dtype=jnp.float32)

    ref_loss = jnp.mean((x - target) ** 2)

    # 1) Tiny-input (single-block) path — the module's natural shape.
    out, loss = content_loss_forward(x, target)
    jax.block_until_ready((out, loss))
    assert jnp.allclose(out, x), "pass-through output mismatch"
    assert jnp.allclose(loss, ref_loss, rtol=1e-5, atol=1e-6), (loss, ref_loss)

    # 2) Tiled path with the 2-way parallel partial-sum split (tiny tiles so
    #    the small example exercises the same code path as large feature maps).
    out2, loss2 = content_loss_forward(x, target, tile_rows=8, num_splits=2)
    jax.block_until_ready((out2, loss2))
    assert jnp.allclose(out2, x), "pass-through output mismatch (tiled)"
    assert jnp.allclose(loss2, ref_loss, rtol=1e-5, atol=1e-6), (loss2, ref_loss)

    # 3) Tiled path, single split, multiple accumulation steps.
    out3, loss3 = content_loss_forward(x, target, tile_rows=8, num_splits=1)
    jax.block_until_ready((out3, loss3))
    assert jnp.allclose(loss3, ref_loss, rtol=1e-5, atol=1e-6), (loss3, ref_loss)

    # 4) Non-lane-divisible shape: wrapper zero-pads both operands (padding
    #    contributes 0 to the SSD; the mean divides by the true element count).
    xr = jax.random.normal(k3, (2, 4, 16, 17), dtype=jnp.float32)
    tr = jax.random.normal(k4, (2, 4, 16, 17), dtype=jnp.float32)
    out4, loss4 = content_loss_forward(xr, tr, tile_rows=8, num_splits=1)
    jax.block_until_ready((out4, loss4))
    ref4 = jnp.mean((xr - tr) ** 2)
    assert jnp.allclose(out4, xr), "pass-through output mismatch (padded)"
    assert jnp.allclose(loss4, ref4, rtol=1e-5, atol=1e-6), (loss4, ref4)

    print("KERNEL_OK")
</pallas_src>

<mosaic_0001>
module attributes {stable_mosaic.version = 11 : i64} {
  func.func @_content_loss_single_kernel(%arg0: memref<16x128xf32, #tpu.memory_space<vmem>>, %arg1: memref<16x128xf32, #tpu.memory_space<vmem>>, %arg2: memref<1x1xf32, #tpu.memory_space<smem>>) attributes {dimension_semantics = [], scalar_prefetch = 0 : i64, scratch_operands = 0 : i64, tpu.core_type = #tpu.core_type<tc>} {
    %c0 = arith.constant 0 : index
    %c0_0 = arith.constant 0 : index
    %0 = vector.load %arg0[%c0, %c0_0] : memref<16x128xf32, #tpu.memory_space<vmem>>, vector<16x128xf32>
    %c0_1 = arith.constant 0 : index
    %c0_2 = arith.constant 0 : index
    %1 = vector.load %arg1[%c0_1, %c0_2] : memref<16x128xf32, #tpu.memory_space<vmem>>, vector<16x128xf32>
    %2 = arith.subf %0, %1 : vector<16x128xf32>
    %3 = arith.mulf %2, %2 : vector<16x128xf32>
    %4 = vector.shape_cast %3 : vector<16x128xf32> to vector<1x16x128xf32>
    %cst = arith.constant dense<0.000000e+00> : vector<1xf32>
    %5 = vector.multi_reduction <add>, %4, %cst [1, 2] : vector<1x16x128xf32> to vector<1xf32>
    %6 = vector.shape_cast %5 : vector<1xf32> to vector<1x1x1xf32>
    %7 = vector.extract %6[0, 0, 0] : f32 from vector<1x1x1xf32>
    %c0_3 = arith.constant 0 : index
    %c0_4 = arith.constant 0 : index
    %8 = memref.load %arg2[%c0_3, %c0_4] : memref<1x1xf32, #tpu.memory_space<smem>>
    memref.store %7, %arg2[%c0_3, %c0_4] : memref<1x1xf32, #tpu.memory_space<smem>>
    return
  }
}

</mosaic_0001>

<llo_original>
// kernel: tpu_custom_call.1
$region0: #{tpu_custom_call.1}
  #allocation0 [shape = 'u32[]', space=smem, size = 0x4, offset = 0x4, fixed_abs, tag = 'smem constant byte address 0x4 - core index']
  #allocation1 [shape = 'u32[144,128]{1,0:T(1,128)}', space=vmem, size = 0x12000, scoped, tag = 'internal scratch']
  %s0 = inlined_call_operand.hbm [shape: f32[16,128], index: 0, kind: input, shape index: {}]
  %s1 = inlined_call_operand.hbm [shape: f32[16,128], index: 1, kind: input, shape index: {}]
  %s2 = inlined_call_operand.hbm [shape: f32[1,1], index: 2, kind: output, shape index: {}]
  %s3 = sld [smem:[#allocation0]]
  $region26: #{tpu_custom_call.1} parent=0
    _
  %s5 = ssub.s32 1, %s3
  %s6 = scalar_select 0, %s5, %s3
  $region1: #{tpu_custom_call.1} parent=0
    #allocation2 [shape = 'u8[8192]{0}', space=vmem, size = 0x2000, scoped, tag = 'input window, operand 0, single buffered']
    #allocation3 [shape = 's32[1]{0}', space=sflag, size = 0x4, scoped, tag = 'scoped memory for tpu_custom_call.1']
    #allocation4 [shape = 's32[1]{0}', space=sflag, size = 0x4, scoped, tag = 'scoped memory for tpu_custom_call.1']
    #allocation5 [shape = 'u8[8192]{0}', space=vmem, size = 0x2000, scoped, tag = 'input window, operand 1, single buffered']
    #allocation6 [shape = 's32[1]{0}', space=sflag, size = 0x4, scoped, tag = 'scoped memory for tpu_custom_call.1']
    #allocation7 [shape = 'u8[512]{0}', space=smem, size = 0x200, scoped, tag = 'output window, operand 0, single buffered']
    %7 = vsyncpa [#allocation3], 0
    %8 = vsyncpa [#allocation6], 0
    %9 = vsyncpa [#allocation4], 0
    // Predicated region
    $region2: #{tpu_custom_call.1} parent=1 // pred_check
      _
    $region3: #{tpu_custom_call.1} parent=1 // pred_check_branch
      %11 = sbr.rel (0) target = $region5
    $region4: #{tpu_custom_call.1} parent=1 // pred_region
      %s13 = ssub.s32 256, 256
      %14 = vsyncadd [#allocation3], %s13
      %s15 = sshll.u32 [#allocation2], 4
      %s16 = int_to_ptr.vmem [resolvable:$true] %s15
      %21 = dma.hbm_to_vmem [thread:$0]  %s0, 256, %s16, [#allocation3], 128, 128, 8
    $region5: #{tpu_custom_call.1} parent=1 // pred_fallthru
      _
    // Predicated region
    $region6: #{tpu_custom_call.1} parent=1 // pred_check
      _
    $region7: #{tpu_custom_call.1} parent=1 // pred_check_branch
      %23 = sbr.rel (0) target = $region9
    $region8: #{tpu_custom_call.1} parent=1 // pred_region
      %s25 = ssub.s32 256, 256
      %26 = vsyncadd [#allocation6], %s25
      %s27 = sshll.u32 [#allocation5], 4
      %s28 = int_to_ptr.vmem [resolvable:$true] %s27
      %33 = dma.hbm_to_vmem [thread:$0]  %s1, 256, %s28, [#allocation6], 128, 128, 8
    $region9: #{tpu_custom_call.1} parent=1 // pred_fallthru
      _
    // Predicated region
    $region10: #{tpu_custom_call.1} parent=1 // pred_check
      _
    $region11: #{tpu_custom_call.1} parent=1 // pred_check_branch
      %35 = sbr.rel (0) target = $region13
    $region12: #{tpu_custom_call.1} parent=1 // pred_region
      %36 = dma.done [#allocation3], 256
    $region13: #{tpu_custom_call.1} parent=1 // pred_fallthru
      _
    // Predicated region
    $region14: #{tpu_custom_call.1} parent=1 // pred_check
      _
    $region15: #{tpu_custom_call.1} parent=1 // pred_check_branch
      %38 = sbr.rel (0) target = $region17
    $region16: #{tpu_custom_call.1} parent=1 // pred_region
      %39 = dma.done [#allocation6], 256
    $region17: #{tpu_custom_call.1} parent=1 // pred_fallthru
      _
    %v40 = vld [vmem:[#allocation2] sm:$0xff]
    %v41 = vld [vmem:[#allocation2 + $0x8] sm:$0xff]
    %v42 = vld [vmem:[#allocation5] sm:$0xff]
    %v43 = vld [vmem:[#allocation5 + $0x8] sm:$0xff]
    %v44 = vsub.f32 %v40, %v42
    %v45 = vsub.f32 %v41, %v43
    %v46 = vmul.f32 %v44, %v44
    %v47 = vmul.f32 %v45, %v45
    %v48 = vadd.f32 %v46, %v47
    %49 = vadd.xlane.f32.xlu0 %v48
    %v50 = vpop.xlane.xlu0 %49
    %v51 = vrot.slane %v50, 4
    %v52 = vadd.f32 %v50, %v51
    %v53 = vrot.slane %v52, 2
    %v54 = vadd.f32 %v52, %v53
    %v55 = vrot.slane %v54, 1
    %v56 = vadd.f32 %v54, %v55
    %s57 = vtos %v56
    %s58 = scalar_lea.smem [#allocation7], 0
    %59 = sst [smem:[%s58]] %s57
    // Predicated region
    $region18: #{tpu_custom_call.1} parent=1 // pred_check
      _
    $region19: #{tpu_custom_call.1} parent=1 // pred_check_branch
      %61 = sbr.rel (0) target = $region21
    $region20: #{tpu_custom_call.1} parent=1 // pred_region
      %s63 = ssub.s32 16, 16
      %64 = vsyncadd [#allocation4], %s63
      %67 = dma.smem_to_hbm [#allocation7], 16, %s2, [#allocation4]
    $region21: #{tpu_custom_call.1} parent=1 // pred_fallthru
      _
    // Predicated region
    $region22: #{tpu_custom_call.1} parent=1 // pred_check
      _
    $region23: #{tpu_custom_call.1} parent=1 // pred_check_branch
      %69 = sbr.rel (0) target = $region25
    $region24: #{tpu_custom_call.1} parent=1 // pred_region
      %70 = dma.done [#allocation4], 16
    $region25: #{tpu_custom_call.1} parent=1 // pred_fallthru
      _
    %71 = sfence
    %72 = vsyncpa [#allocation3], 1
    %73 = vsyncpa [#allocation6], 1
    %74 = vsyncpa [#allocation4], 1

</llo_original>
